<compile_context>
chip_gen: v5e
topology: v5e:2x2
jax: 0.10.0
libtpu: 0.0.40
codegen_flags: <defaults>
</compile_context>

<pallas_src>
import functools

import jax
import jax.numpy as jnp
from jax.experimental import pallas as pl
from jax.experimental.pallas import tpu as pltpu


def _round_up(x: int, m: int) -> int:
    return ((x + m - 1) // m) * m


def _cdiv(a: int, b: int) -> int:
    return (a + b - 1) // b


def mlp_kernel(x_ref, w1_ref, b1_ref, w2_ref, b2_ref, o_ref):
    # x_ref: (TB, n_states) f32 ; w1_ref: (n_states, H_pad) f32 ; b1_ref: (1, H_pad) f32
    # w2_ref: (H_pad, A_pad) f32|bf16 ; b2_ref: (1, A_pad) f32 ; o_ref: (TB, A_pad)
    x = x_ref[...]
    w1 = w1_ref[...]
    n_states = x.shape[1]  # static (tiny, e.g. 2)

    # Layer 1 on the VPU: K=n_states contraction as n_states broadcast FMAs
    # ((TB,1) * (1,H_pad)).  Kept in f32 (v5e-safe); no MXU round-trip.
    h = x[:, 0:1] * w1[0:1, :]
    for k in range(1, n_states):
        h = h + x[:, k : k + 1] * w1[k : k + 1, :]
    h = h + b1_ref[...]
    h = jnp.maximum(h, 0.0)  # ReLU on the VPU

    # Layer 2 on the MXU.  If w2 was padded as bf16 in the wrapper, cast h to
    # match (single-pass bf16 matmul, half the weight traffic); accumulation
    # stays f32 via preferred_element_type.
    w2 = w2_ref[...]
    out = jnp.dot(h.astype(w2.dtype), w2, preferred_element_type=jnp.float32)
    out = out + b2_ref[...]
    o_ref[...] = out.astype(o_ref.dtype)


def pad_params(w1, b1, w2, b2, matmul_dtype=jnp.float32):
    """Zero-pad weights/biases to lane-dense (multiple-of-128) feature dims.

    w1: (n_states, n_hidden), b1: (1, n_hidden),
    w2: (n_hidden, n_actions), b2: (1, n_actions).
    Zero columns/rows are exactly neutral through ReLU and the second matmul.
    `matmul_dtype` controls the stored dtype of w2 (bf16 for throughput mode).
    """
    n_states, n_hidden = w1.shape
    n_actions = w2.shape[1]
    h_pad = _round_up(n_hidden, 128)
    a_pad = _round_up(n_actions, 128)

    w1p = jnp.zeros((n_states, h_pad), jnp.float32).at[:, :n_hidden].set(w1)
    b1p = jnp.zeros((1, h_pad), jnp.float32).at[:, :n_hidden].set(b1)
    w2p = (
        jnp.zeros((h_pad, a_pad), matmul_dtype)
        .at[:n_hidden, :n_actions]
        .set(w2.astype(matmul_dtype))
    )
    b2p = jnp.zeros((1, a_pad), jnp.float32).at[:, :n_actions].set(b2)
    return w1p, b1p, w2p, b2p


def _choose_batch_tiling(B: int, max_tile_b: int, two_tile_threshold: int = 1024):
    """Pick (tile_b, num_tiles) that minimizes batch padding.

    num_tiles = cdiv(B, max_tile_b); tile_b = round_up(cdiv(B, num_tiles), 8).
    For large B, force >= 2 (even) tiles so the parallel axis can shard
    across v7x's two TensorCores.
    """
    num_tiles = max(1, _cdiv(B, max_tile_b))
    if B >= two_tile_threshold:
        if num_tiles == 1:
            num_tiles = 2
        elif num_tiles > 2 and num_tiles % 2 == 1:
            num_tiles += 1
    tile_b = _round_up(_cdiv(B, num_tiles), 8)
    return tile_b, num_tiles


def net_forward(x, w1p, b1p, w2p, b2p, n_actions, max_tile_b=2048,
                out_dtype=jnp.float32):
    """x: (B, n_states) f32 -> (B, n_actions) f32.

    Params must already be padded with `pad_params`.  Batch is tiled with a
    parallel grid axis; weights stay VMEM-resident across grid steps.
    """
    B, n_states = x.shape
    a_pad = w2p.shape[1]

    # Cap the tile so default scoped VMEM (16 MiB on v5e) is always enough;
    # push vmem_limit_bytes instead if you ever need larger tiles.
    max_tile_b = min(max_tile_b, 4096)
    tile_b, num_tiles = _choose_batch_tiling(B, max_tile_b)
    b_pad = tile_b * num_tiles

    # Pad batch only if needed (callers that pre-pad to the tile skip this op).
    if b_pad != B:
        x = jnp.zeros((b_pad, n_states), x.dtype).at[:B].set(x)

    out_padded = pl.pallas_call(
        mlp_kernel,
        out_shape=jax.ShapeDtypeStruct((b_pad, a_pad), out_dtype),
        grid_spec=pl.GridSpec(
            grid=(num_tiles,),
            in_specs=[
                # x tiled over batch.
                pl.BlockSpec((tile_b, n_states), lambda i: (i, 0)),
                # Weights / biases: single full blocks, resident across steps.
                pl.BlockSpec(w1p.shape, lambda i: (0, 0)),
                pl.BlockSpec(b1p.shape, lambda i: (0, 0)),
                pl.BlockSpec(w2p.shape, lambda i: (0, 0)),
                pl.BlockSpec(b2p.shape, lambda i: (0, 0)),
            ],
            out_specs=pl.BlockSpec((tile_b, a_pad), lambda i: (i, 0)),
        ),
        compiler_params=pltpu.CompilerParams(
            dimension_semantics=("parallel",),
        ),
    )(x, w1p, b1p, w2p, b2p)

    # Slice away batch padding and lane padding outside the kernel; return f32.
    return out_padded[:B, :n_actions].astype(jnp.float32)


def init_params(key, n_states, n_hidden, n_actions):
    """Deterministic init mimicking nn.Linear default U[-1/sqrt(fan_in), +1/sqrt(fan_in)]."""
    k1, k2, k3, k4 = jax.random.split(key, 4)
    bound1 = 1.0 / jnp.sqrt(jnp.float32(n_states))
    bound2 = 1.0 / jnp.sqrt(jnp.float32(n_hidden))
    # Stored as (in, out) == transpose of PyTorch's (out, in) weight layout.
    w1 = jax.random.uniform(k1, (n_states, n_hidden), jnp.float32, -bound1, bound1)
    b1 = jax.random.uniform(k2, (1, n_hidden), jnp.float32, -bound1, bound1)
    w2 = jax.random.uniform(k3, (n_hidden, n_actions), jnp.float32, -bound2, bound2)
    b2 = jax.random.uniform(k4, (1, n_actions), jnp.float32, -bound2, bound2)
    return w1, b1, w2, b2


if __name__ == "__main__":
    # Shapes implied by the module: n_states=2 (RoomEnv observation), n_hidden=50,
    # n_actions=4 (Discrete(4)).  Small batch of observations for the main test.
    n_states, n_hidden, n_actions = 2, 50, 4
    batch = 2

    key = jax.random.PRNGKey(0)
    kx, kp = jax.random.split(key)
    x = jax.random.normal(kx, (batch, n_states), dtype=jnp.float32)
    w1, b1, w2, b2 = init_params(kp, n_states, n_hidden, n_actions)

    # Pad parameters once (outside the hot path), exact f32 storage.
    w1p, b1p, w2p, b2p = pad_params(w1, b1, w2, b2)

    # Single jit'd dispatch at the call site (latency path, review item 9).
    fwd = jax.jit(functools.partial(net_forward, n_actions=n_actions))

    # --- small-batch latency path (B=2) ---------------------------------
    out = fwd(x, w1p, b1p, w2p, b2p)
    jax.block_until_ready(out)
    ref = jnp.maximum(x @ w1 + b1, 0.0) @ w2 + b2
    assert out.shape == (batch, n_actions)
    assert jnp.allclose(out, ref, atol=1e-5, rtol=1e-5)

    # --- non-multiple batch: minimal-padding tiling (300 -> 304 rows) ----
    big_batch = 300
    xb = jax.random.normal(jax.random.PRNGKey(1), (big_batch, n_states), jnp.float32)
    outb = fwd(xb, w1p, b1p, w2p, b2p)
    jax.block_until_ready(outb)
    refb = jnp.maximum(xb @ w1 + b1, 0.0) @ w2 + b2
    assert outb.shape == (big_batch, n_actions)
    assert jnp.allclose(outb, refb, atol=1e-4, rtol=1e-4)

    # --- large-batch throughput mode: bf16 MXU operands + bf16 writeback,
    #     two 2048-row tiles (shards across both TCs on v7x) ---------------
    w1p16, b1p16, w2p16, b2p16 = pad_params(w1, b1, w2, b2, matmul_dtype=jnp.bfloat16)
    fwd_bf16 = jax.jit(
        functools.partial(net_forward, n_actions=n_actions, out_dtype=jnp.bfloat16)
    )
    huge_batch = 4096
    xh = jax.random.normal(jax.random.PRNGKey(2), (huge_batch, n_states), jnp.float32)
    outh = fwd_bf16(xh, w1p16, b1p16, w2p16, b2p16)
    jax.block_until_ready(outh)
    refh = jnp.maximum(xh @ w1 + b1, 0.0) @ w2 + b2
    assert outh.shape == (huge_batch, n_actions)
    assert jnp.allclose(outh, refh, atol=5e-2, rtol=5e-2)

    print("KERNEL_OK")
</pallas_src>

<mosaic_0001>
module attributes {stable_mosaic.version = 11 : i64} {
  func.func @mlp_kernel(%arg0: i32, %arg1: memref<8x2xf32, #tpu.memory_space<vmem>>, %arg2: memref<2x128xf32, #tpu.memory_space<vmem>>, %arg3: memref<1x128xf32, #tpu.memory_space<vmem>>, %arg4: memref<128x128xf32, #tpu.memory_space<vmem>>, %arg5: memref<1x128xf32, #tpu.memory_space<vmem>>, %arg6: memref<8x128xf32, #tpu.memory_space<vmem>>) attributes {dimension_semantics = [#tpu.dimension_semantics<parallel>], iteration_bounds = array<i64: 1>, scalar_prefetch = 0 : i64, scratch_operands = 0 : i64, tpu.core_type = #tpu.core_type<tc>, window_params = [{transform_indices = @transform_0, window_bounds = array<i64: 8, 2>}, {pipeline_mode = #tpu.pipeline_mode<synchronous>, transform_indices = @transform_1, window_bounds = array<i64: 2, 128>}, {pipeline_mode = #tpu.pipeline_mode<synchronous>, transform_indices = @transform_2, window_bounds = array<i64: 1, 128>}, {pipeline_mode = #tpu.pipeline_mode<synchronous>, transform_indices = @transform_3, window_bounds = array<i64: 128, 128>}, {pipeline_mode = #tpu.pipeline_mode<synchronous>, transform_indices = @transform_4, window_bounds = array<i64: 1, 128>}, {transform_indices = @transform_5, window_bounds = array<i64: 8, 128>}]} {
    %c0 = arith.constant 0 : index
    %c0_0 = arith.constant 0 : index
    %0 = vector.load %arg1[%c0, %c0_0] : memref<8x2xf32, #tpu.memory_space<vmem>>, vector<8x2xf32>
    %c0_1 = arith.constant 0 : index
    %c0_2 = arith.constant 0 : index
    %1 = vector.load %arg2[%c0_1, %c0_2] : memref<2x128xf32, #tpu.memory_space<vmem>>, vector<2x128xf32>
    %2 = vector.extract_strided_slice %0 {offsets = [0, 0], sizes = [8, 1], strides = [1, 1]} : vector<8x2xf32> to vector<8x1xf32>
    %3 = vector.extract_strided_slice %1 {offsets = [0, 0], sizes = [1, 128], strides = [1, 1]} : vector<2x128xf32> to vector<1x128xf32>
    %4 = vector.broadcast %2 : vector<8x1xf32> to vector<8x128xf32>
    %5 = vector.broadcast %3 : vector<1x128xf32> to vector<8x128xf32>
    %6 = arith.mulf %4, %5 : vector<8x128xf32>
    %7 = vector.extract_strided_slice %0 {offsets = [0, 1], sizes = [8, 1], strides = [1, 1]} : vector<8x2xf32> to vector<8x1xf32>
    %8 = vector.extract_strided_slice %1 {offsets = [1, 0], sizes = [1, 128], strides = [1, 1]} : vector<2x128xf32> to vector<1x128xf32>
    %9 = vector.broadcast %7 : vector<8x1xf32> to vector<8x128xf32>
    %10 = vector.broadcast %8 : vector<1x128xf32> to vector<8x128xf32>
    %11 = arith.mulf %9, %10 : vector<8x128xf32>
    %12 = arith.addf %6, %11 : vector<8x128xf32>
    %c0_3 = arith.constant 0 : index
    %c0_4 = arith.constant 0 : index
    %13 = vector.load %arg3[%c0_3, %c0_4] : memref<1x128xf32, #tpu.memory_space<vmem>>, vector<1x128xf32>
    %14 = vector.broadcast %13 : vector<1x128xf32> to vector<8x128xf32>
    %15 = arith.addf %12, %14 : vector<8x128xf32>
    %cst = arith.constant 0.000000e+00 : f32
    %16 = vector.broadcast %cst : f32 to vector<8x128xf32>
    %17 = arith.maximumf %15, %16 : vector<8x128xf32>
    %c0_5 = arith.constant 0 : index
    %c0_6 = arith.constant 0 : index
    %18 = vector.load %arg4[%c0_5, %c0_6] : memref<128x128xf32, #tpu.memory_space<vmem>>, vector<128x128xf32>
    %cst_7 = arith.constant dense<0.000000e+00> : vector<8x128xf32>
    %19 = tpu.matmul %17, %18, %cst_7 {dimension_numbers = #tpu.dot_dimension_numbers<[1], [0], [0], [1], [0, 0, 1, 1], [], []>} : vector<8x128xf32>, vector<128x128xf32>, vector<8x128xf32> -> vector<8x128xf32>
    %c0_8 = arith.constant 0 : index
    %c0_9 = arith.constant 0 : index
    %20 = vector.load %arg5[%c0_8, %c0_9] : memref<1x128xf32, #tpu.memory_space<vmem>>, vector<1x128xf32>
    %21 = vector.broadcast %20 : vector<1x128xf32> to vector<8x128xf32>
    %22 = arith.addf %19, %21 : vector<8x128xf32>
    %c0_10 = arith.constant 0 : index
    %c0_11 = arith.constant 0 : index
    %23 = vector.load %arg6[%c0_10, %c0_11] : memref<8x128xf32, #tpu.memory_space<vmem>>, vector<8x128xf32>
    tpu.vector_store %arg6[%c0_10, %c0_11], %22 {strides = array<i32>} : memref<8x128xf32, #tpu.memory_space<vmem>>, vector<8x128xf32>,
    return
  }
  func.func @transform_0(%arg0: i32) -> (i32, i32) {
    %c0_i32 = arith.constant 0 : i32
    %c0_i32_0 = arith.constant 0 : i32
    return %arg0, %c0_i32 : i32, i32
  }
  func.func @transform_1(%arg0: i32) -> (i32, i32) {
    %c0_i32 = arith.constant 0 : i32
    %c0_i32_0 = arith.constant 0 : i32
    %c0_i32_1 = arith.constant 0 : i32
    return %c0_i32, %c0_i32_0 : i32, i32
  }
  func.func @transform_2(%arg0: i32) -> (i32, i32) {
    %c0_i32 = arith.constant 0 : i32
    %c0_i32_0 = arith.constant 0 : i32
    %c0_i32_1 = arith.constant 0 : i32
    return %c0_i32, %c0_i32_0 : i32, i32
  }
  func.func @transform_3(%arg0: i32) -> (i32, i32) {
    %c0_i32 = arith.constant 0 : i32
    %c0_i32_0 = arith.constant 0 : i32
    %c0_i32_1 = arith.constant 0 : i32
    return %c0_i32, %c0_i32_0 : i32, i32
  }
  func.func @transform_4(%arg0: i32) -> (i32, i32) {
    %c0_i32 = arith.constant 0 : i32
    %c0_i32_0 = arith.constant 0 : i32
    %c0_i32_1 = arith.constant 0 : i32
    return %c0_i32, %c0_i32_0 : i32, i32
  }
  func.func @transform_5(%arg0: i32) -> (i32, i32) {
    %c0_i32 = arith.constant 0 : i32
    %c0_i32_0 = arith.constant 0 : i32
    return %arg0, %c0_i32 : i32, i32
  }
}

</mosaic_0001>

<llo_original>
// kernel: net_forward.1
$region0: #{net_forward.1}
  #allocation0 [shape = 'u32[]', space=smem, size = 0x4, offset = 0x4, fixed_abs, tag = 'smem constant byte address 0x4 - core index']
  #allocation1 [shape = 'u32[72,128]{1,0:T(1,128)}', space=vmem, size = 0x9000, scoped, tag = 'internal scratch']
  %s0 = inlined_call_operand.vmem [shape: f32[8,2], index: 0, kind: input, shape index: {}]
  %s1 = inlined_call_operand.vmem [shape: f32[2,128], index: 1, kind: input, shape index: {}]
  %s2 = inlined_call_operand.vmem [shape: f32[1,128], index: 2, kind: input, shape index: {}]
  %s3 = inlined_call_operand.hbm [shape: f32[128,128], index: 3, kind: input, shape index: {}]
  %s4 = inlined_call_operand.vmem [shape: f32[1,128], index: 4, kind: input, shape index: {}]
  %s5 = inlined_call_operand.vmem [shape: f32[8,128], index: 5, kind: output, shape index: {}]
  %s6 = sld [smem:[#allocation0]]
  $region34: #{net_forward.1} parent=0
    _
  %s8 = ssub.s32 1, %s6
  %s9 = scalar_select 0, %s8, %s6
  $region1: #{net_forward.1} parent=0
    #allocation2 [shape = 'u8[65536]{0}', space=vmem, size = 0x10000, scoped, tag = 'input window, operand 3, single buffered']
    #allocation3 [shape = 's32[1]{0}', space=sflag, size = 0x4, scoped, tag = 'scoped memory for net_forward.1']
    %10 = vsyncpa [#allocation3], 0
    // Predicated region
    $region2: #{net_forward.1} parent=1 // pred_check
      _
    $region3: #{net_forward.1} parent=1 // pred_check_branch
      %12 = sbr.rel (0) target = $region5
    $region4: #{net_forward.1} parent=1 // pred_region
      _
    $region5: #{net_forward.1} parent=1 // pred_fallthru
      _
    // Predicated region
    $region6: #{net_forward.1} parent=1 // pred_check
      _
    $region7: #{net_forward.1} parent=1 // pred_check_branch
      %14 = sbr.rel (0) target = $region9
    $region8: #{net_forward.1} parent=1 // pred_region
      _
    $region9: #{net_forward.1} parent=1 // pred_fallthru
      _
    // Predicated region
    $region10: #{net_forward.1} parent=1 // pred_check
      _
    $region11: #{net_forward.1} parent=1 // pred_check_branch
      %16 = sbr.rel (0) target = $region13
    $region12: #{net_forward.1} parent=1 // pred_region
      _
    $region13: #{net_forward.1} parent=1 // pred_fallthru
      _
    // Predicated region
    $region14: #{net_forward.1} parent=1 // pred_check
      _
    $region15: #{net_forward.1} parent=1 // pred_check_branch
      %18 = sbr.rel (0) target = $region17
    $region16: #{net_forward.1} parent=1 // pred_region
      %20 = vsyncadd [#allocation3], 0
      %s21 = sshll.u32 %s3, 4
      %s22 = int_to_ptr.hbm [resolvable:$true] %s21
      %s23 = sshll.u32 [#allocation2], 4
      %s24 = int_to_ptr.vmem [resolvable:$true] %s23
      %29 = dma.hbm_to_vmem [thread:$0]  %s22, 2048, %s24, [#allocation3], 128, 128, 8
    $region17: #{net_forward.1} parent=1 // pred_fallthru
      _
    // Predicated region
    $region18: #{net_forward.1} parent=1 // pred_check
      _
    $region19: #{net_forward.1} parent=1 // pred_check_branch
      %31 = sbr.rel (0) target = $region21
    $region20: #{net_forward.1} parent=1 // pred_region
      _
    $region21: #{net_forward.1} parent=1 // pred_fallthru
      _
    // Predicated region
    $region22: #{net_forward.1} parent=1 // pred_check
      _
    $region23: #{net_forward.1} parent=1 // pred_check_branch
      %33 = sbr.rel (0) target = $region25
    $region24: #{net_forward.1} parent=1 // pred_region
      %35 = dma.done [#allocation3], 2048
    $region25: #{net_forward.1} parent=1 // pred_fallthru
      _
    %v36 = vld [vmem:[%s0] sm:$0xff]
    %v37 = vld [vmem:[%s1] sm:$0x3]
    %39 = vset.pattern.permute.xlu0 0
    %40 = vperm.xlu0 %39, %v36
    %v41 = vpop.permute.xlu0 %40
    %v43 = vperm.slane %v37, 0
    %v44 = vmul.f32 %v41, %v43
    %45 = vset.pattern.permute.xlu0 1
    %46 = vperm.xlu0 %45, %v36
    %v47 = vpop.permute.xlu0 %46
    %v49 = vperm.slane %v37, 1
    %v50 = vmul.f32 %v47, %v49
    %v51 = vadd.f32 %v44, %v50
    %v52 = vld [vmem:[%s2] sm:$0x1]
    %v54 = vperm.slane %v52, 0
    %v56 = vadd.f32 %v51, %v54
    %v57 = vmax.f32 %v56, 0.0
    %v58 = vld [vmem:[#allocation2] sm:$0xff]
    %v59 = vld [vmem:[#allocation2 + $0x8] sm:$0xff]
    %v60 = vld [vmem:[#allocation2 + $0x10] sm:$0xff]
    %v61 = vld [vmem:[#allocation2 + $0x18] sm:$0xff]
    %v62 = vld [vmem:[#allocation2 + $0x20] sm:$0xff]
    %v63 = vld [vmem:[#allocation2 + $0x28] sm:$0xff]
    %v64 = vld [vmem:[#allocation2 + $0x30] sm:$0xff]
    %v65 = vld [vmem:[#allocation2 + $0x38] sm:$0xff]
    %v66 = vld [vmem:[#allocation2 + $0x40] sm:$0xff]
    %v67 = vld [vmem:[#allocation2 + $0x48] sm:$0xff]
    %v68 = vld [vmem:[#allocation2 + $0x50] sm:$0xff]
    %v69 = vld [vmem:[#allocation2 + $0x58] sm:$0xff]
    %v70 = vld [vmem:[#allocation2 + $0x60] sm:$0xff]
    %v71 = vld [vmem:[#allocation2 + $0x68] sm:$0xff]
    %v72 = vld [vmem:[#allocation2 + $0x70] sm:$0xff]
    %v73 = vld [vmem:[#allocation2 + $0x78] sm:$0xff]
    %v74 = vld [vmem:[%s4] sm:$0x1]
    %v76 = vperm.slane %v74, 0
    %78 = vmatpush.msra.mxu0 %v73
    %79 = vmatpush.msra.mxu0 %v72
    %80 = vmatpush.msra.mxu0 %v71
    %81 = vmatpush.msra.mxu0 %v70
    %82 = vmatpush.msra.mxu0 %v69
    %83 = vmatpush.msra.mxu0 %v68
    %84 = vmatpush.msra.mxu0 %v67
    %85 = vmatpush.msra.mxu0 %v66
    %86 = vmatpush.msra.mxu0 %v65
    %87 = vmatpush.msra.mxu0 %v64
    %88 = vmatpush.msra.mxu0 %v63
    %89 = vmatpush.msra.mxu0 %v62
    %90 = vmatpush.msra.mxu0 %v61
    %91 = vmatpush.msra.mxu0 %v60
    %92 = vmatpush.msra.mxu0 %v59
    %93 = vmatpush.msra.mxu0 %v58
    %94 = vmatmul.f32.gmra.mxu0 %v57
    %v95 = vpop.f32.mrf.mxu0
    %v96 = vadd.f32 %v76, %v95
    %97 = vdwg.mxu0
    %98 = vst [vmem:[%s5] sm:$0xff] %v96
    // Predicated region
    $region26: #{net_forward.1} parent=1 // pred_check
      _
    $region27: #{net_forward.1} parent=1 // pred_check_branch
      %100 = sbr.rel (0) target = $region29
    $region28: #{net_forward.1} parent=1 // pred_region
      _
    $region29: #{net_forward.1} parent=1 // pred_fallthru
      _
    // Predicated region
    $region30: #{net_forward.1} parent=1 // pred_check
      _
    $region31: #{net_forward.1} parent=1 // pred_check_branch
      %102 = sbr.rel (0) target = $region33
    $region32: #{net_forward.1} parent=1 // pred_region
      _
    $region33: #{net_forward.1} parent=1 // pred_fallthru
      _
    %103 = vsyncpa [#allocation3], 1

</llo_original>
